<compile_context>
chip_gen: v7x
topology: tpu7x:2x2x1
jax: 0.10.0
libtpu: 0.0.40
codegen_flags: <defaults>
</compile_context>

<pallas_src>
import functools
import numpy as np
import jax
import jax.numpy as jnp
from jax.experimental import pallas as pl
from jax.experimental.pallas import tpu as pltpu


# --------------------------------------------------------------------------
# Generation-aware tile targets / VMEM limits
# --------------------------------------------------------------------------
def _tpu_vmem_bytes():
    try:
        info = pltpu.get_tpu_info()
        for attr in ("vmem_capacity_bytes", "vmem_bytes"):
            v = getattr(info, attr, None)
            if v:
                return int(v)
    except Exception:
        pass
    return 128 * 1024 * 1024


_VMEM_CAP = _tpu_vmem_bytes()
if _VMEM_CAP >= 100 * 1024 * 1024:          # 128 MiB parts (v5e / v6e)
    _VMEM_LIMIT = 100 * 1024 * 1024
    _TM, _TN, _TK = 512, 512, 1024          # plain linear tiles
    _TM_FUSED, _TF = 256, 512               # (tm, D)-resident fused kernels
    _TQ = 256                               # attention query tile
else:                                        # 64 MiB part (v7x)
    _VMEM_LIMIT = 48 * 1024 * 1024
    _TM, _TN, _TK = 256, 256, 512
    _TM_FUSED, _TF = 128, 256
    _TQ = 128


def _row_tile(m, target):
    """Row (sublane) tile: full dim when small, else the target (multiple of 8).
    Used with a pl.cdiv grid, so awkward M just gives a masked partial last tile."""
    return m if m <= target else target


def _pick_div(dim, target, align=128):
    """Largest divisor of `dim` that is a multiple of `align` and <= target.
    Falls back to the full dim only when `dim` itself is not lane-aligned
    (in which case a full block is the only legal BlockSpec anyway)."""
    if dim <= target:
        return dim
    best = None
    t = align
    while t <= target:
        if dim % t == 0:
            best = t
        t += align
    return best if best is not None else dim


# --------------------------------------------------------------------------
# Tiled linear (optionally with GELU epilogue)
# --------------------------------------------------------------------------
def _linear_kernel(x_ref, w_ref, b_ref, o_ref, acc_ref, *, activation):
    @pl.when(pl.program_id(2) == 0)
    def _():
        acc_ref[...] = jnp.zeros_like(acc_ref)

    acc_ref[...] += jnp.dot(x_ref[...].astype(w_ref.dtype), w_ref[...],
                            preferred_element_type=jnp.float32)

    @pl.when(pl.program_id(2) == pl.num_programs(2) - 1)
    def _():
        y = acc_ref[...] + b_ref[...].astype(jnp.float32)
        if activation == "gelu":
            # PyTorch F.gelu default = exact (erf) gelu; runs on the EUP slot.
            y = jax.nn.gelu(y, approximate=False)
        o_ref[...] = y.astype(o_ref.dtype)


def linear(x, w, b, activation=None):
    """x: (M, K) f32;  w: (K, N) bf16/f32;  b: (N,) f32  ->  (M, N) f32."""
    M, K = x.shape
    N = w.shape[1]
    tm = _row_tile(M, _TM)
    tk = _pick_div(K, _TK)
    tn = _pick_div(N, _TN)
    return pl.pallas_call(
        functools.partial(_linear_kernel, activation=activation),
        grid=(pl.cdiv(M, tm), N // tn, K // tk),
        out_shape=jax.ShapeDtypeStruct((M, N), x.dtype),
        in_specs=[
            pl.BlockSpec((tm, tk), lambda i, j, k: (i, k)),
            pl.BlockSpec((tk, tn), lambda i, j, k: (k, j)),
            pl.BlockSpec((1, tn), lambda i, j, k: (0, j)),
        ],
        out_specs=pl.BlockSpec((tm, tn), lambda i, j, k: (i, j)),
        scratch_shapes=[pltpu.VMEM((tm, tn), jnp.float32)],
        compiler_params=pltpu.CompilerParams(
            dimension_semantics=("parallel", "parallel", "arbitrary"),
            vmem_limit_bytes=_VMEM_LIMIT),
    )(x, w, b.reshape(1, N))


# --------------------------------------------------------------------------
# Fused: out-projection + residual add + LayerNorm
# --------------------------------------------------------------------------
def _linear_res_ln_kernel(x_ref, w_ref, b_ref, r_ref, g_ref, bb_ref,
                          o_ref, acc_ref, *, eps):
    @pl.when(pl.program_id(1) == 0)
    def _():
        acc_ref[...] = jnp.zeros_like(acc_ref)

    acc_ref[...] += jnp.dot(x_ref[...].astype(w_ref.dtype), w_ref[...],
                            preferred_element_type=jnp.float32)

    @pl.when(pl.program_id(1) == pl.num_programs(1) - 1)
    def _():
        z = (acc_ref[...] + b_ref[...].astype(jnp.float32)
             + r_ref[...].astype(jnp.float32))
        mean = jnp.mean(z, axis=-1, keepdims=True)
        var = jnp.mean(jnp.square(z - mean), axis=-1, keepdims=True)
        nrm = (z - mean) * jax.lax.rsqrt(var + eps)
        o_ref[...] = (nrm * g_ref[...].astype(jnp.float32)
                      + bb_ref[...].astype(jnp.float32)).astype(o_ref.dtype)


def linear_residual_layernorm(x, w, b, res, gamma, beta, eps):
    """LayerNorm(res + x @ w + b); the full output row (N) stays resident in VMEM."""
    M, K = x.shape
    N = w.shape[1]
    tm = _row_tile(M, _TM_FUSED)
    tk = _pick_div(K, _TK)
    return pl.pallas_call(
        functools.partial(_linear_res_ln_kernel, eps=eps),
        grid=(pl.cdiv(M, tm), K // tk),
        out_shape=jax.ShapeDtypeStruct((M, N), x.dtype),
        in_specs=[
            pl.BlockSpec((tm, tk), lambda i, k: (i, k)),
            pl.BlockSpec((tk, N), lambda i, k: (k, 0)),
            pl.BlockSpec((1, N), lambda i, k: (0, 0)),
            pl.BlockSpec((tm, N), lambda i, k: (i, 0)),
            pl.BlockSpec((1, N), lambda i, k: (0, 0)),
            pl.BlockSpec((1, N), lambda i, k: (0, 0)),
        ],
        out_specs=pl.BlockSpec((tm, N), lambda i, k: (i, 0)),
        scratch_shapes=[pltpu.VMEM((tm, N), jnp.float32)],
        compiler_params=pltpu.CompilerParams(
            dimension_semantics=("parallel", "arbitrary"),
            vmem_limit_bytes=_VMEM_LIMIT),
    )(x, w, b.reshape(1, N), res, gamma.reshape(1, N), beta.reshape(1, N))


# --------------------------------------------------------------------------
# Fused: FFN1 + GELU + FFN2 + residual add + LayerNorm (d_ff tiled in VMEM)
# --------------------------------------------------------------------------
def _ffn_res_ln_kernel(x_ref, w1_ref, b1_ref, w2_ref, b2_ref, g_ref, bb_ref,
                       o_ref, acc_ref, *, eps):
    @pl.when(pl.program_id(1) == 0)
    def _():
        acc_ref[...] = jnp.zeros_like(acc_ref)

    h = jnp.dot(x_ref[...].astype(w1_ref.dtype), w1_ref[...],
                preferred_element_type=jnp.float32)
    # TODO(synk): approximate=True (tanh) would offload less onto the single EUP
    # at large tf, at the cost of deviating from PyTorch's exact erf gelu.
    h = jax.nn.gelu(h + b1_ref[...].astype(jnp.float32), approximate=False)
    acc_ref[...] += jnp.dot(h.astype(w2_ref.dtype), w2_ref[...],
                            preferred_element_type=jnp.float32)

    @pl.when(pl.program_id(1) == pl.num_programs(1) - 1)
    def _():
        # x block doubles as the residual (same tensor) -> one (tm, D) HBM read saved.
        z = (acc_ref[...] + b2_ref[...].astype(jnp.float32)
             + x_ref[...].astype(jnp.float32))
        mean = jnp.mean(z, axis=-1, keepdims=True)
        var = jnp.mean(jnp.square(z - mean), axis=-1, keepdims=True)
        nrm = (z - mean) * jax.lax.rsqrt(var + eps)
        o_ref[...] = (nrm * g_ref[...].astype(jnp.float32)
                      + bb_ref[...].astype(jnp.float32)).astype(o_ref.dtype)


def ffn_residual_layernorm(x, w1, b1, w2, b2, gamma, beta, eps):
    """LayerNorm(x + GELU(x @ w1 + b1) @ w2 + b2); (M, d_ff) intermediate never hits HBM."""
    M, D = x.shape
    Dff = w1.shape[1]
    tm = _row_tile(M, _TM_FUSED)
    tf = _pick_div(Dff, _TF)
    return pl.pallas_call(
        functools.partial(_ffn_res_ln_kernel, eps=eps),
        grid=(pl.cdiv(M, tm), Dff // tf),
        out_shape=jax.ShapeDtypeStruct((M, D), x.dtype),
        in_specs=[
            pl.BlockSpec((tm, D), lambda i, f: (i, 0)),
            pl.BlockSpec((D, tf), lambda i, f: (0, f)),
            pl.BlockSpec((1, tf), lambda i, f: (0, f)),
            pl.BlockSpec((tf, D), lambda i, f: (f, 0)),
            pl.BlockSpec((1, D), lambda i, f: (0, 0)),
            pl.BlockSpec((1, D), lambda i, f: (0, 0)),
            pl.BlockSpec((1, D), lambda i, f: (0, 0)),
        ],
        out_specs=pl.BlockSpec((tm, D), lambda i, f: (i, 0)),
        scratch_shapes=[pltpu.VMEM((tm, D), jnp.float32)],
        compiler_params=pltpu.CompilerParams(
            dimension_semantics=("parallel", "arbitrary"),
            vmem_limit_bytes=_VMEM_LIMIT),
    )(x, w1, b1.reshape(1, Dff), w2, b2.reshape(1, D),
      gamma.reshape(1, D), beta.reshape(1, D))


# --------------------------------------------------------------------------
# Attention: grid over (batch, head, q-tile); pad mask row + in-kernel causal
# --------------------------------------------------------------------------
def _attn_kernel(q_ref, k_ref, v_ref, kpad_ref, ctx_ref, prob_ref, *, scale, causal):
    q = q_ref[0, 0].astype(jnp.float32)      # (tq, Dh)
    k = k_ref[0, 0].astype(jnp.float32)      # (Sk, Dh)
    v = v_ref[0, 0].astype(jnp.float32)      # (Sk, Dh)
    tq = q.shape[0]
    sk = k.shape[0]

    # scores = q @ k^T  (contract last dims, no materialized transpose)
    s = jax.lax.dot_general(q, k, (((1,), (1,)), ((), ())),
                            preferred_element_type=jnp.float32) * scale   # (tq, Sk)

    key_pad = kpad_ref[0] > 0                # (1, Sk) bool, broadcast over queries
    if causal:
        q_pos = pl.program_id(2) * tq + jax.lax.broadcasted_iota(jnp.int32, (tq, sk), 0)
        k_pos = jax.lax.broadcasted_iota(jnp.int32, (tq, sk), 1)
        masked = key_pad | (k_pos > q_pos)
    else:
        masked = key_pad
    s = jnp.where(masked, jnp.float32(-1e9), s)

    # explicit softmax: exp on the EUP, approx reciprocal instead of a VPU divide.
    # Fully-padded query rows give a uniform softmax, matching the -1e9 reference.
    m = jnp.max(s, axis=-1, keepdims=True)
    p = jnp.exp(s - m)
    denom = jnp.sum(p, axis=-1, keepdims=True)
    probs = p * pl.reciprocal(denom, approx=True)

    # TODO(synk): the probs output is kept (module semantics); dropping it would
    # remove the dominant O(S^2) HBM write per attention.
    prob_ref[0, 0] = probs.astype(prob_ref.dtype)
    ctx_ref[0, 0] = jnp.dot(probs, v,
                            preferred_element_type=jnp.float32).astype(ctx_ref.dtype)


def attention(q, k, v, kpad, scale, *, causal):
    """q,k,v: (B, H, S, Dh) f32;  kpad: (B, 1, Sk) int32 (1 = key is pad)."""
    B, H, Sq, Dh = q.shape
    Sk = k.shape[2]
    tq = _row_tile(Sq, _TQ)

    flops = 4 * B * H * Sq * Sk * Dh
    transc = B * H * Sq * Sk
    bytes_acc = 4 * (2 * B * H * Sq * Dh + 2 * B * H * Sk * Dh
                     + B * H * Sq * Sk + B * Sk)

    ctx, probs = pl.pallas_call(
        functools.partial(_attn_kernel, scale=scale, causal=causal),
        grid=(B, H, pl.cdiv(Sq, tq)),
        out_shape=(
            jax.ShapeDtypeStruct((B, H, Sq, Dh), q.dtype),
            jax.ShapeDtypeStruct((B, H, Sq, Sk), jnp.float32),
        ),
        in_specs=[
            pl.BlockSpec((1, 1, tq, Dh), lambda b, h, i: (b, h, i, 0)),
            pl.BlockSpec((1, 1, Sk, Dh), lambda b, h, i: (b, h, 0, 0)),
            pl.BlockSpec((1, 1, Sk, Dh), lambda b, h, i: (b, h, 0, 0)),
            pl.BlockSpec((1, 1, Sk), lambda b, h, i: (b, 0, 0)),
        ],
        out_specs=(
            pl.BlockSpec((1, 1, tq, Dh), lambda b, h, i: (b, h, i, 0)),
            pl.BlockSpec((1, 1, tq, Sk), lambda b, h, i: (b, h, i, 0)),
        ),
        compiler_params=pltpu.CompilerParams(
            dimension_semantics=("parallel", "parallel", "parallel"),
            vmem_limit_bytes=_VMEM_LIMIT),
        cost_estimate=pl.CostEstimate(flops=flops, transcendentals=transc,
                                      bytes_accessed=bytes_acc),
    )(q, k, v, kpad)
    return ctx, probs


# --------------------------------------------------------------------------
# Model glue (plain JAX): embeddings, pad vectors, head reshapes, layer wiring
# --------------------------------------------------------------------------
def get_sinusoid_encoding_table(n_seq, d_hidn):
    pos = np.arange(n_seq)[:, None].astype(np.float64)
    i = np.arange(d_hidn)[None, :]
    angle = pos / np.power(10000, 2 * (i // 2) / d_hidn)
    table = np.zeros((n_seq, d_hidn), dtype=np.float32)
    table[:, 0::2] = np.sin(angle[:, 0::2])
    table[:, 1::2] = np.cos(angle[:, 1::2])
    return jnp.asarray(table)


def multi_head_attention(x_q, x_kv, kpad, p, cfg, *, self_attention, causal):
    B, Sq, D = x_q.shape
    Sk = x_kv.shape[1]
    H, Dh = cfg["n_head"], cfg["d_head"]
    HD = H * Dh

    if self_attention:
        # fused QKV projection (weights pre-concatenated at init)
        qkv = linear(x_q.reshape(B * Sq, D), p["wqkv"], p["bqkv"])
        q, k, v = qkv[:, :HD], qkv[:, HD:2 * HD], qkv[:, 2 * HD:]
    else:
        q = linear(x_q.reshape(B * Sq, D), p["wq"], p["bq"])
        kv = linear(x_kv.reshape(B * Sk, D), p["wkv"], p["bkv"])
        k, v = kv[:, :HD], kv[:, HD:]

    # TODO(synk): head split/merge still goes through an XLA transpose; a fully
    # in-kernel per-head BlockSpec on the lane dim needs d_head % 128 == 0.
    q = q.reshape(B, Sq, H, Dh).transpose(0, 2, 1, 3)
    k = k.reshape(B, Sk, H, Dh).transpose(0, 2, 1, 3)
    v = v.reshape(B, Sk, H, Dh).transpose(0, 2, 1, 3)

    scale = 1.0 / float(np.sqrt(Dh))
    ctx, probs = attention(q, k, v, kpad, scale, causal=causal)

    ctx = ctx.transpose(0, 2, 1, 3).reshape(B * Sq, HD)
    # TODO(synk): dropout omitted (eval mode / p=0), matches nn.Dropout in eval.
    return ctx, probs


def decoder_layer(x, enc_out, dec_kpad, enc_kpad, p, cfg):
    B, S, D = x.shape
    x2d = x.reshape(B * S, D)

    sa_ctx, sa_prob = multi_head_attention(x, x, dec_kpad, p["self_attn"], cfg,
                                           self_attention=True, causal=True)
    x1 = linear_residual_layernorm(sa_ctx, p["self_attn"]["wo"], p["self_attn"]["bo"],
                                   x2d, p["ln1_g"], p["ln1_b"], cfg["eps"])

    ca_ctx, ca_prob = multi_head_attention(x1.reshape(B, S, D), enc_out, enc_kpad,
                                           p["cross_attn"], cfg,
                                           self_attention=False, causal=False)
    x2 = linear_residual_layernorm(ca_ctx, p["cross_attn"]["wo"], p["cross_attn"]["bo"],
                                   x1, p["ln2_g"], p["ln2_b"], cfg["eps"])

    x3 = ffn_residual_layernorm(x2, p["ffn_w1"], p["ffn_b1"], p["ffn_w2"], p["ffn_b2"],
                                p["ln3_g"], p["ln3_b"], cfg["eps"])
    return x3.reshape(B, S, D), sa_prob, ca_prob


def decoder_forward(params, cfg, dec_inputs, enc_inputs, enc_outputs):
    B, S = dec_inputs.shape
    S_enc = enc_inputs.shape[1]
    i_pad = cfg["i_pad"]

    # positions (1-based), zeroed at pad tokens (reference uses literal 0 here)
    pos = jnp.broadcast_to(jnp.arange(S, dtype=dec_inputs.dtype) + 1, (B, S))
    pos = jnp.where(dec_inputs == 0, jnp.zeros_like(pos), pos)

    dec_out = params["dec_emb"][dec_inputs] + params["pos_emb"][pos]

    # only key-pad row vectors are fed to the attention kernels;
    # the causal part of the self-attention mask is generated in-kernel.
    dec_kpad = (dec_inputs == i_pad).astype(jnp.int32).reshape(B, 1, S)
    enc_kpad = (enc_inputs == i_pad).astype(jnp.int32).reshape(B, 1, S_enc)

    self_probs, enc_probs = [], []
    for lp in params["layers"]:
        dec_out, sp, ep = decoder_layer(dec_out, enc_outputs, dec_kpad, enc_kpad, lp, cfg)
        self_probs.append(sp)
        enc_probs.append(ep)
    return dec_out, self_probs, enc_probs


# --------------------------------------------------------------------------
# Deterministic parameter init (matmul weights stored in cfg["param_dtype"])
# --------------------------------------------------------------------------
def init_params(key, cfg):
    D, H, Dh, Dff = cfg["d_hidn"], cfg["n_head"], cfg["d_head"], cfg["d_ff"]
    HD = H * Dh
    pdt = cfg.get("param_dtype", jnp.bfloat16)

    def dense(k, fan_in, fan_out):
        w = (jax.random.normal(k, (fan_in, fan_out), jnp.float32) * 0.02).astype(pdt)
        b = jnp.zeros((fan_out,), jnp.float32)
        return w, b

    keys = jax.random.split(key, 1 + cfg["n_layer"])
    params = {
        "dec_emb": jax.random.normal(keys[0], (cfg["n_dec_vocab"], D), jnp.float32) * 0.02,
        "pos_emb": get_sinusoid_encoding_table(cfg["n_dec_seq"] + 1, D),
        "layers": [],
    }
    for li in range(cfg["n_layer"]):
        lk = jax.random.split(keys[1 + li], 10)
        lp = {}

        # self-attention: pre-fused QKV
        wq, bq = dense(lk[0], D, HD)
        wk, bk = dense(lk[1], D, HD)
        wv, bv = dense(lk[2], D, HD)
        wo, bo = dense(lk[3], HD, D)
        lp["self_attn"] = dict(
            wqkv=jnp.concatenate([wq, wk, wv], axis=1),
            bqkv=jnp.concatenate([bq, bk, bv], axis=0),
            wo=wo, bo=bo)

        # cross-attention: separate Q, pre-fused KV
        wq2, bq2 = dense(lk[4], D, HD)
        wk2, bk2 = dense(lk[5], D, HD)
        wv2, bv2 = dense(lk[6], D, HD)
        wo2, bo2 = dense(lk[7], HD, D)
        lp["cross_attn"] = dict(
            wq=wq2, bq=bq2,
            wkv=jnp.concatenate([wk2, wv2], axis=1),
            bkv=jnp.concatenate([bk2, bv2], axis=0),
            wo=wo2, bo=bo2)

        w1, b1 = dense(lk[8], D, Dff)
        w2, b2 = dense(lk[9], Dff, D)
        lp.update(
            ffn_w1=w1, ffn_b1=b1, ffn_w2=w2, ffn_b2=b2,
            ln1_g=jnp.ones((D,), jnp.float32), ln1_b=jnp.zeros((D,), jnp.float32),
            ln2_g=jnp.ones((D,), jnp.float32), ln2_b=jnp.zeros((D,), jnp.float32),
            ln3_g=jnp.ones((D,), jnp.float32), ln3_b=jnp.zeros((D,), jnp.float32),
        )
        params["layers"].append(lp)
    return params


# --------------------------------------------------------------------------
if __name__ == "__main__":
    cfg = dict(
        n_dec_vocab=32, n_dec_seq=8, d_hidn=32, n_head=4, d_head=8,
        d_ff=64, n_layer=2, i_pad=0, eps=1e-12,
        # bf16 weight storage / MXU inputs (f32 accumulation); set to
        # jnp.float32 to reproduce the PyTorch reference numerics exactly.
        param_dtype=jnp.bfloat16,
    )
    B, S_dec, S_enc = 2, 8, 16

    root = jax.random.PRNGKey(0)
    k_par, k_dec, k_enc, k_encout = jax.random.split(root, 4)
    params = init_params(k_par, cfg)

    dec_inputs = jax.random.randint(k_dec, (B, S_dec), 1, cfg["n_dec_vocab"], dtype=jnp.int32)
    dec_inputs = dec_inputs.at[1, -2:].set(0)               # some padding in batch 1
    enc_inputs = jax.random.randint(k_enc, (B, S_enc), 1, cfg["n_dec_vocab"], dtype=jnp.int32)
    enc_inputs = enc_inputs.at[0, -3:].set(0)               # some padding in batch 0
    enc_outputs = jax.random.normal(k_encout, (B, S_enc, cfg["d_hidn"]), jnp.float32)

    dec_out, self_probs, enc_probs = decoder_forward(params, cfg, dec_inputs,
                                                     enc_inputs, enc_outputs)
    jax.block_until_ready((dec_out, self_probs, enc_probs))

    assert dec_out.shape == (B, S_dec, cfg["d_hidn"])
    assert len(self_probs) == cfg["n_layer"] and self_probs[0].shape == (B, cfg["n_head"], S_dec, S_dec)
    assert len(enc_probs) == cfg["n_layer"] and enc_probs[0].shape == (B, cfg["n_head"], S_dec, S_enc)
    assert bool(jnp.isfinite(dec_out).all())
    print("KERNEL_OK")
</pallas_src>

<mosaic_0001>
module attributes {stable_mosaic.version = 11 : i64} {
  func.func @_linear_kernel(%arg0: i32, %arg1: i32, %arg2: i32, %arg3: memref<16x32xf32, #tpu.memory_space<vmem>>, %arg4: memref<32x96xbf16, #tpu.memory_space<vmem>>, %arg5: memref<1x96xf32, #tpu.memory_space<vmem>>, %arg6: memref<16x96xf32, #tpu.memory_space<vmem>>, %arg7: memref<16x96xf32, #tpu.memory_space<vmem>>) attributes {dimension_semantics = [#tpu.dimension_semantics<parallel>, #tpu.dimension_semantics<parallel>, #tpu.dimension_semantics<arbitrary>], iteration_bounds = array<i64: 1, 1, 1>, scalar_prefetch = 0 : i64, scratch_operands = 1 : i64, tpu.core_type = #tpu.core_type<tc>, window_params = [{transform_indices = @transform_0, window_bounds = array<i64: 16, 32>}, {transform_indices = @transform_1, window_bounds = array<i64: 32, 96>}, {transform_indices = @transform_2, window_bounds = array<i64: 1, 96>}, {transform_indices = @transform_3, window_bounds = array<i64: 16, 96>}]} {
    %c0_i32 = arith.constant 0 : i32
    %0 = arith.cmpi eq, %arg2, %c0_i32 : i32
    %1 = arith.extui %0 : i1 to i32
    %c0_i32_0 = arith.constant 0 : i32
    %2 = arith.cmpi ne, %1, %c0_i32_0 : i32
    scf.if %2 {
      %cst_10 = arith.constant 0.000000e+00 : f32
      %13 = vector.broadcast %cst_10 : f32 to vector<16x96xf32>
      %c0_11 = arith.constant 0 : index
      %c0_12 = arith.constant 0 : index
      %14 = vector.load %arg7[%c0_11, %c0_12] : memref<16x96xf32, #tpu.memory_space<vmem>>, vector<16x96xf32>
      tpu.vector_store %arg7[%c0_11, %c0_12], %13 {strides = array<i32>} : memref<16x96xf32, #tpu.memory_space<vmem>>, vector<16x96xf32>,
    } else {
    }
    %c0 = arith.constant 0 : index
    %c0_1 = arith.constant 0 : index
    %3 = vector.load %arg7[%c0, %c0_1] : memref<16x96xf32, #tpu.memory_space<vmem>>, vector<16x96xf32>
    %c0_2 = arith.constant 0 : index
    %c0_3 = arith.constant 0 : index
    %4 = vector.load %arg3[%c0_2, %c0_3] : memref<16x32xf32, #tpu.memory_space<vmem>>, vector<16x32xf32>
    %5 = arith.truncf %4 : vector<16x32xf32> to vector<16x32xbf16>
    %c0_4 = arith.constant 0 : index
    %c0_5 = arith.constant 0 : index
    %6 = vector.load %arg4[%c0_4, %c0_5] : memref<32x96xbf16, #tpu.memory_space<vmem>>, vector<32x96xbf16>
    %cst = arith.constant dense<0.000000e+00> : vector<16x96xf32>
    %7 = tpu.matmul %5, %6, %cst {dimension_numbers = #tpu.dot_dimension_numbers<[1], [0], [0], [1], [0, 0, 1, 1], [], []>} : vector<16x32xbf16>, vector<32x96xbf16>, vector<16x96xf32> -> vector<16x96xf32>
    %8 = arith.addf %3, %7 : vector<16x96xf32>
    %c0_6 = arith.constant 0 : index
    %c0_7 = arith.constant 0 : index
    %9 = vector.load %arg7[%c0_6, %c0_7] : memref<16x96xf32, #tpu.memory_space<vmem>>, vector<16x96xf32>
    tpu.vector_store %arg7[%c0_6, %c0_7], %8 {strides = array<i32>} : memref<16x96xf32, #tpu.memory_space<vmem>>, vector<16x96xf32>,
    %c0_i32_8 = arith.constant 0 : i32
    %10 = arith.cmpi eq, %arg2, %c0_i32_8 : i32
    %11 = arith.extui %10 : i1 to i32
    %c0_i32_9 = arith.constant 0 : i32
    %12 = arith.cmpi ne, %11, %c0_i32_9 : i32
    scf.if %12 {
      %c0_10 = arith.constant 0 : index
      %c0_11 = arith.constant 0 : index
      %13 = vector.load %arg7[%c0_10, %c0_11] : memref<16x96xf32, #tpu.memory_space<vmem>>, vector<16x96xf32>
      %c0_12 = arith.constant 0 : index
      %c0_13 = arith.constant 0 : index
      %14 = vector.load %arg5[%c0_12, %c0_13] : memref<1x96xf32, #tpu.memory_space<vmem>>, vector<1x96xf32>
      %15 = vector.broadcast %14 : vector<1x96xf32> to vector<16x96xf32>
      %16 = arith.addf %13, %15 : vector<16x96xf32>
      %c0_14 = arith.constant 0 : index
      %c0_15 = arith.constant 0 : index
      %17 = vector.load %arg6[%c0_14, %c0_15] : memref<16x96xf32, #tpu.memory_space<vmem>>, vector<16x96xf32>
      tpu.vector_store %arg6[%c0_14, %c0_15], %16 {strides = array<i32>} : memref<16x96xf32, #tpu.memory_space<vmem>>, vector<16x96xf32>,
    } else {
    }
    return
  }
  func.func @transform_0(%arg0: i32, %arg1: i32, %arg2: i32) -> (i32, i32) {
    %c0_i32 = arith.constant 0 : i32
    return %arg0, %arg2 : i32, i32
  }
  func.func @transform_1(%arg0: i32, %arg1: i32, %arg2: i32) -> (i32, i32) {
    %c0_i32 = arith.constant 0 : i32
    return %arg2, %arg1 : i32, i32
  }
  func.func @transform_2(%arg0: i32, %arg1: i32, %arg2: i32) -> (i32, i32) {
    %c0_i32 = arith.constant 0 : i32
    %c0_i32_0 = arith.constant 0 : i32
    return %c0_i32, %arg1 : i32, i32
  }
  func.func @transform_3(%arg0: i32, %arg1: i32, %arg2: i32) -> (i32, i32) {
    %c0_i32 = arith.constant 0 : i32
    return %arg0, %arg1 : i32, i32
  }
}

</mosaic_0001>

<llo_original>
// kernel: tpu_custom_call.1
$region0: #{tpu_custom_call.1}
  #allocation0 [shape = 'u32[]', space=smem, size = 0x4, offset = 0x4, fixed_abs, tag = 'smem constant byte address 0x4 - core index']
  #allocation1 [shape = 'u32[144,128]{1,0:T(1,128)}', space=vmem, size = 0x12000, scoped, tag = 'internal scratch']
  #allocation2 [shape = 'f32[16,96]{1,0:T(8,128)}', space=vmem, size = 0x2000, scoped, tag = 'scratch operand']
  %s0 = inlined_call_operand.hbm [shape: f32[16,32], index: 0, kind: input, shape index: {}]
  %s1 = inlined_call_operand.hbm [shape: bf16[32,96], index: 1, kind: input, shape index: {}]
  %s2 = inlined_call_operand.hbm [shape: f32[1,96], index: 2, kind: input, shape index: {}]
  %s3 = inlined_call_operand.hbm [shape: f32[16,96], index: 3, kind: output, shape index: {}]
  %s4 = sld [smem:[#allocation0]]
  $region42: #{tpu_custom_call.1} parent=0
    _
  %s6 = ssub.s32 1, %s4
  %s7 = scalar_select 0, %s6, %s4
  $region1: #{tpu_custom_call.1} parent=0
    #allocation3 [shape = 'u8[8192]{0}', space=vmem, size = 0x2000, scoped, tag = 'input window, operand 0, single buffered']
    #allocation4 [shape = 's32[1]{0}', space=sflag, size = 0x4, scoped, tag = 'scoped memory for tpu_custom_call.1']
    #allocation5 [shape = 's32[1]{0}', space=sflag, size = 0x4, scoped, tag = 'scoped memory for tpu_custom_call.1']
    #allocation6 [shape = 'u8[8192]{0}', space=vmem, size = 0x2000, scoped, tag = 'input window, operand 1, single buffered']
    #allocation7 [shape = 's32[1]{0}', space=sflag, size = 0x4, scoped, tag = 'scoped memory for tpu_custom_call.1']
    #allocation8 [shape = 'u8[512]{0}', space=vmem, size = 0x400, scoped, tag = 'input window, operand 2, single buffered']
    #allocation9 [shape = 'u8[8192]{0}', space=vmem, size = 0x2000, scoped, tag = 'output window, operand 0, single buffered']
    %8 = vsyncpa [#allocation4], 0
    %9 = vsyncpa [#allocation7], 0
    %10 = vsyncpa [#allocation5], 0
    // Predicated region
    $region2: #{tpu_custom_call.1} parent=1 // pred_check
      _
    $region3: #{tpu_custom_call.1} parent=1 // pred_check_branch
      %12 = sbr.rel (0) target = $region5
    $region4: #{tpu_custom_call.1} parent=1 // pred_region
      %s14 = ssub.s32 256, 256
      %15 = vsyncadd [#allocation4], %s14
      %s16 = sshll.u32 [#allocation3], 4
      %s17 = int_to_ptr.vmem [resolvable:$true] %s16
      %22 = dma.hbm_to_vmem [thread:$0]  %s0, 256, %s17, [#allocation4], 128, 128, 8
    $region5: #{tpu_custom_call.1} parent=1 // pred_fallthru
      _
    // Predicated region
    $region6: #{tpu_custom_call.1} parent=1 // pred_check
      _
    $region7: #{tpu_custom_call.1} parent=1 // pred_check_branch
      %24 = sbr.rel (0) target = $region9
    $region8: #{tpu_custom_call.1} parent=1 // pred_region
      %s26 = ssub.s32 256, 256
      %27 = vsyncadd [#allocation7], %s26
      %s28 = sshll.u32 [#allocation6], 4
      %s29 = int_to_ptr.vmem [resolvable:$true] %s28
      %34 = dma.hbm_to_vmem [thread:$0]  %s1, 256, %s29, [#allocation7], 64, 64, 4
    $region9: #{tpu_custom_call.1} parent=1 // pred_fallthru
      _
    // Predicated region
    $region10: #{tpu_custom_call.1} parent=1 // pred_check
      _
    $region11: #{tpu_custom_call.1} parent=1 // pred_check_branch
      %36 = sbr.rel (0) target = $region13
    $region12: #{tpu_custom_call.1} parent=1 // pred_region
      %s38 = ssub.s32 16, 16
      %39 = vsyncadd [#allocation7], %s38
      %s41 = sshll.u32 [#allocation8], 4
      %s42 = int_to_ptr.vmem [resolvable:$true] %s41
      %44 = dma.hbm_to_vmem [thread:$0]  %s2, 16, %s42, [#allocation7]
    $region13: #{tpu_custom_call.1} parent=1 // pred_fallthru
      _
    // Predicated region
    $region14: #{tpu_custom_call.1} parent=1 // pred_check
      _
    $region15: #{tpu_custom_call.1} parent=1 // pred_check_branch
      %46 = sbr.rel (0) target = $region17
    $region16: #{tpu_custom_call.1} parent=1 // pred_region
      %47 = dma.done [#allocation4], 256
    $region17: #{tpu_custom_call.1} parent=1 // pred_fallthru
      _
    // Predicated region
    $region18: #{tpu_custom_call.1} parent=1 // pred_check
      _
    $region19: #{tpu_custom_call.1} parent=1 // pred_check_branch
      %49 = sbr.rel (0) target = $region21
    $region20: #{tpu_custom_call.1} parent=1 // pred_region
      %50 = dma.done [#allocation7], 256
    $region21: #{tpu_custom_call.1} parent=1 // pred_fallthru
      _
    // Predicated region
    $region22: #{tpu_custom_call.1} parent=1 // pred_check
      _
    $region23: #{tpu_custom_call.1} parent=1 // pred_check_branch
      %52 = sbr.rel (0) target = $region25
    $region24: #{tpu_custom_call.1} parent=1 // pred_region
      %53 = dma.done [#allocation7], 16
    $region25: #{tpu_custom_call.1} parent=1 // pred_fallthru
      _
    %p55 = scmp.eq.s32.totalorder 0, 0
    // Predicated region
    $region26: #{tpu_custom_call.1} parent=1 // pred_check
      %p56 = pneg %p55
    $region27: #{tpu_custom_call.1} parent=1 // pred_check_branch
      %58 = sbr.rel (%p56) target = $region29
    $region28: #{tpu_custom_call.1} parent=1 // pred_region
      %vm59 = vcmask 785408
      %60 = vst.msk [vmem:[#allocation2] sm:$0xff] %vm59, 0.0
      %61 = vst.msk [vmem:[#allocation2 + $0x8] sm:$0xff] %vm59, 0.0
    $region29: #{tpu_custom_call.1} parent=1 // pred_fallthru
      _
    %v62 = vld [vmem:[#allocation2] sm:$0xff]
    %v63 = vld [vmem:[#allocation2 + $0x8] sm:$0xff]
    %v64 = vld [vmem:[#allocation3] sm:$0xff]
    %v65 = vld [vmem:[#allocation3 + $0x8] sm:$0xff]
    %v66 = vpack.c.bf16 %v65, %v64
    %v67 = vld [vmem:[#allocation6] sm:$0xf]
    %v68 = vld [vmem:[#allocation6 + $0x4] sm:$0xf]
    %v69 = vld [vmem:[#allocation6 + $0x8] sm:$0xf]
    %v70 = vld [vmem:[#allocation6 + $0xc] sm:$0xf]
    %v75 = vunpack.c.l.b16 %v67
    %v76 = vunpack.c.l.b16 %v68
    %v77 = vunpack.c.l.b16 %v69
    %v78 = vunpack.c.l.b16 %v70
    %v79 = vpack.c.b16 %v76, %v75
    %v80 = vpack.c.b16 %v78, %v77
    %vm83 = vcmask 261120
    %v85 = vsel %vm83, %v66, 0
    %87 = vmatprep.subr.bf16.mxu0 0
    %88 = vmatpush1.bf16.msra.mxu0 %v79
    %89 = vmatprep.subr.bf16.mxu0 0
    %90 = vmatpush1.bf16.msra.mxu0 %v80
    %91 = vmatprep.subr.bf16.mxu0 0
    %92 = vmatpush1.bf16.msra.mxu0 0
    %93 = vmatprep.subr.bf16.mxu0 0
    %94 = vmatpush1.bf16.msra.mxu0 0
    %95 = vmatprep.subr.bf16.mxu0 0
    %96 = vmatpush1.bf16.msra.mxu0 0
    %97 = vmatprep.subr.bf16.mxu0 0
    %98 = vmatpush1.bf16.msra.mxu0 0
    %99 = vmatprep.subr.bf16.mxu0 0
    %100 = vmatpush1.bf16.msra.mxu0 0
    %101 = vmatprep.subr.bf16.mxu0 0
    %102 = vmatpush1.bf16.msra.mxu0 0
    %103 = vmatprep.subr.bf16.mxu0 0
    %104 = vmatpush1.bf16.msra.mxu0 0
    %105 = vmatprep.subr.bf16.mxu0 0
    %106 = vmatpush1.bf16.msra.mxu0 0
    %107 = vmatprep.subr.bf16.mxu0 0
    %108 = vmatpush1.bf16.msra.mxu0 0
    %109 = vmatprep.subr.bf16.mxu0 0
    %110 = vmatpush1.bf16.msra.mxu0 0
    %111 = vmatprep.subr.bf16.mxu0 0
    %112 = vmatpush1.bf16.msra.mxu0 0
    %113 = vmatprep.subr.bf16.mxu0 0
    %114 = vmatpush1.bf16.msra.mxu0 0
    %115 = vmatprep.subr.bf16.mxu0 0
    %116 = vmatpush1.bf16.msra.mxu0 0
    %117 = vmatprep.subr.bf16.mxu0 0
    %118 = vmatpush1.bf16.msra.mxu0 0
    %119 = vmatprep.mubr.bf16.mxu0 0
    %120 = vmatmul.mubr.bf16.gmra.mrb[0].mxu0 %v85
    %v121 = vpop.f32.mrb[0].mxu0
    %v122 = vadd.f32 0.0, %v121
    %v123 = vpop.f32.mrb[0].mxu0
    %v124 = vpop.f32.mrb[0].mxu0
    %v125 = vadd.f32 0.0, %v124
    %v126 = vpop.f32.mrb[0].mxu0
    %127 = vdwg.mxu0
    %v128 = vadd.f32 %v62, %v122
    %v129 = vadd.f32 %v63, %v125
    %vm130 = vcmask 785408
    %131 = vst.msk [vmem:[#allocation2] sm:$0xff] %vm130, %v128
    %132 = vst.msk [vmem:[#allocation2 + $0x8] sm:$0xff] %vm130, %v129
    // Predicated region
    $region30: #{tpu_custom_call.1} parent=1 // pred_check
      %p133 = pneg %p55
    $region31: #{tpu_custom_call.1} parent=1 // pred_check_branch
      %135 = sbr.rel (%p133) target = $region33
    $region32: #{tpu_custom_call.1} parent=1 // pred_region
      %v136 = vld [vmem:[#allocation2] sm:$0xff]
      %v137 = vld [vmem:[#allocation2 + $0x8] sm:$0xff]
      %v138 = vld [vmem:[#allocation8] sm:$0x1]
      %v140 = vlaneseq
      %v141 = vshrl.u32 %v140, 7
      %v142 = vsub.s32 0, %v141
      %v143 = vrot.slane %v138, %v142
      %v145 = vadd.f32 %v136, %v143
      %v146 = vadd.f32 %v137, %v143
      %147 = vst.msk [vmem:[#allocation9] sm:$0xff] %vm130, %v145
      %148 = vst.msk [vmem:[#allocation9 + $0x8] sm:$0xff] %vm130, %v146
    $region33: #{tpu_custom_call.1} parent=1 // pred_fallthru
      _
    // Predicated region
    $region34: #{tpu_custom_call.1} parent=1 // pred_check
      _
    $region35: #{tpu_custom_call.1} parent=1 // pred_check_branch
      %150 = sbr.rel (0) target = $region37
    $region36: #{tpu_custom_call.1} parent=1 // pred_region
      %s152 = ssub.s32 256, 256
      %153 = vsyncadd [#allocation5], %s152
      %s154 = sshll.u32 [#allocation9], 4
      %s155 = int_to_ptr.vmem [resolvable:$true] %s154
      %160 = dma.vmem_to_hbm [thread:$0]  %s155, 256, %s3, [#allocation5], 128, 128, 8
    $region37: #{tpu_custom_call.1} parent=1 // pred_fallthru
      _
    // Predicated region
    $region38: #{tpu_custom_call.1} parent=1 // pred_check
      _
    $region39: #{tpu_custom_call.1} parent=1 // pred_check_branch
      %162 = sbr.rel (0) target = $region41
    $region40: #{tpu_custom_call.1} parent=1 // pred_region
      %163 = dma.done [#allocation5], 256
    $region41: #{tpu_custom_call.1} parent=1 // pred_fallthru
      _
    %164 = vsyncpa [#allocation4], 1
    %165 = vsyncpa [#allocation7], 1
    %166 = vsyncpa [#allocation5], 1

</llo_original>
